<compile_context>
chip_gen: v6e
topology: v6e:2x2x1
jax: 0.10.0
libtpu: 0.0.40
codegen_flags: <defaults>
</compile_context>

<pallas_src>
import functools

import jax
import jax.numpy as jnp
from jax.experimental import pallas as pl
from jax.experimental.pallas import tpu as pltpu


def _round_up(x, m):
    return ((x + m - 1) // m) * m


def _cdiv(a, b):
    return (a + b - 1) // b


_MAX_BB = 4096        # keeps double-buffered tiles well under v5e's 16 MiB scoped VMEM
_TARGET_STEPS = 4     # aim for a small, even grid (>=2 steps feeds both v7x TCs)


def mlp_kernel(x_ref,
               w1_ref, b1_ref,
               w2_ref, b2_ref,
               w3_ref, b3_ref,
               w4_ref, b4_ref,
               o_ref):
    # All four linear layers + ReLU hidden activations fused; weights/biases
    # are resident in VMEM for the whole grid, only the x/out tiles stream.
    # Matmul operands are in the weights' dtype (bf16 by default); the MXU
    # accumulates in f32 and bias add / ReLU happen in f32.
    cdt = w1_ref.dtype

    h = x_ref[...]
    h = jnp.dot(h, w1_ref[...], preferred_element_type=jnp.float32) + b1_ref[...]
    h = jnp.maximum(h, 0.0).astype(cdt)          # ReLU (hidden_activation)

    h = jnp.dot(h, w2_ref[...], preferred_element_type=jnp.float32) + b2_ref[...]
    h = jnp.maximum(h, 0.0).astype(cdt)

    h = jnp.dot(h, w3_ref[...], preferred_element_type=jnp.float32) + b3_ref[...]
    h = jnp.maximum(h, 0.0).astype(cdt)

    out = jnp.dot(h, w4_ref[...], preferred_element_type=jnp.float32) + b4_ref[...]
    # out_activation is None and out_softmax is False in the default config.
    o_ref[...] = out.astype(o_ref.dtype)


def prepare_params(params, compute_dtype=jnp.bfloat16):
    """One-time parameter prep (hoisted out of the per-call path).

    * Pads the last layer's output dim up to a multiple of 128 so the kernel's
      output stores are lane-dense (unmasked vst).
    * Casts weights to the compute dtype (bf16 default: native MXU rate on
      v5e/v6e/v7x); biases stay f32 (added after the f32 accumulation).

    Returns (prepped_params_tuple, d_out).
    """
    (w1, b1), (w2, b2), (w3, b3), (w4, b4) = params
    d_out = w4.shape[1]
    d_out_p = _round_up(d_out, 128)
    if d_out_p != d_out:
        w4 = jnp.pad(w4, ((0, 0), (0, d_out_p - d_out)))
        b4 = jnp.pad(b4, ((0, 0), (0, d_out_p - d_out)))

    cdt = jnp.dtype(compute_dtype)
    ws = [w.astype(cdt) for w in (w1, w2, w3, w4)]
    bs = [b.astype(jnp.float32) for b in (b1, b2, b3, b4)]
    prepped = (ws[0], bs[0], ws[1], bs[1], ws[2], bs[2], ws[3], bs[3])
    return prepped, d_out


def _pick_tile(B, block_b):
    """Batch tile (multiple of 8) sized from B; prefers an even >=2-step grid."""
    B8 = max(_round_up(B, 8), 8)
    if block_b is not None:
        bb = _round_up(min(block_b, B8), 8)
    else:
        bb = min(_MAX_BB, _round_up(_cdiv(B8, _TARGET_STEPS), 8))
    steps = _cdiv(B8, bb)
    # v7x megacore: the batch axis is "parallel"; an even step count keeps both
    # TensorCores busy. Best effort only.
    if steps > 1 and steps % 2 == 1:
        bb2 = _round_up(_cdiv(B8, steps + 1), 8)
        if bb2 > 0 and _cdiv(B8, bb2) % 2 == 0:
            bb = bb2
            steps = _cdiv(B8, bb2)
    return bb, steps


@functools.partial(jax.jit, static_argnames=("d_out", "block_b"))
def mlp_forward(x, prepped, d_out, block_b=None):
    """x: (B, D_in). prepped: output of prepare_params. d_out: real output dim."""
    w1, b1, w2, b2, w3, b3, w4, b4 = prepped
    B, d_in = x.shape
    d_out_p = w4.shape[1]
    cdt = w1.dtype

    bb, steps = _pick_tile(B, block_b)
    B_p = bb * steps

    # Only x is touched per call: cast to the compute dtype and pad the ragged
    # batch tail (padded rows produce ReLU(bias) garbage internally; they are
    # sliced off before returning and never reduced over).
    x_c = x.astype(cdt)
    if B_p != B:
        x_c = jnp.pad(x_c, ((0, B_p - B), (0, 0)))

    # NOTE: the x tile (bb, d_in=16) is lane-sparse (16/128 lanes); layer 1 is
    # ~4% of FLOPs so this is accepted. Weights use default double-buffering
    # (<1 MiB total here); single-buffering them only matters for wide hiddens.
    full = lambda a: pl.BlockSpec(a.shape, lambda i: (0, 0))

    flops = 2 * B_p * (d_in * w1.shape[1]
                       + w2.shape[0] * w2.shape[1]
                       + w3.shape[0] * w3.shape[1]
                       + w4.shape[0] * d_out_p)
    bytes_accessed = (x_c.size * x_c.dtype.itemsize
                      + B_p * d_out_p * 4
                      + sum(int(a.size) * a.dtype.itemsize for a in prepped))

    out_p = pl.pallas_call(
        mlp_kernel,
        out_shape=jax.ShapeDtypeStruct((B_p, d_out_p), jnp.float32),
        grid_spec=pltpu.PrefetchScalarGridSpec(
            num_scalar_prefetch=0,
            grid=(steps,),
            in_specs=[
                pl.BlockSpec((bb, d_in), lambda i: (i, 0)),   # x tile streams
                full(w1), full(b1),
                full(w2), full(b2),
                full(w3), full(b3),
                full(w4), full(b4),
            ],
            out_specs=pl.BlockSpec((bb, d_out_p), lambda i: (i, 0)),
        ),
        compiler_params=pltpu.CompilerParams(
            # Batch axis is embarrassingly parallel -> megacore sharding on v7x.
            dimension_semantics=("parallel",)),
        cost_estimate=pl.CostEstimate(
            flops=flops, transcendentals=0, bytes_accessed=bytes_accessed),
    )(x_c, w1, b1, w2, b2, w3, b3, w4, b4)

    # Slice off batch padding and the lane padding of the last layer.
    return out_p[:B, :d_out]


def init_params(key, input_dimension, output_dimension,
                num_neurons=(128, 128, 128)):
    """Deterministic parameter init (kaiming_normal-like, zero biases).

    Weights returned as (in_features, out_features).
    """
    dims = [input_dimension, *num_neurons, output_dimension]
    params = []
    for i in range(len(dims) - 1):
        key, sub = jax.random.split(key)
        fan_in, fan_out = dims[i], dims[i + 1]
        std = (2.0 / fan_in) ** 0.5
        w = jax.random.normal(sub, (fan_in, fan_out), jnp.float32) * std
        b = jnp.zeros((1, fan_out), jnp.float32)
        params.append((w, b))
    return params


def reference_forward(x, params):
    """Pure-JAX f32 reference of the same forward pass."""
    out = x
    for (w, b) in params[:-1]:
        out = jnp.maximum(out @ w + b, 0.0)
    w, b = params[-1]
    return out @ w + b


def reference_forward_emulated(x, params, compute_dtype=jnp.bfloat16):
    """Pure-JAX reference using the SAME numeric recipe as the kernel:
    matmul operands in compute_dtype, f32 accumulation, f32 bias add / ReLU."""
    cdt = jnp.dtype(compute_dtype)
    h = x.astype(cdt)
    for (w, b) in params[:-1]:
        h = jnp.dot(h, w.astype(cdt), preferred_element_type=jnp.float32) + b
        h = jnp.maximum(h, 0.0).astype(cdt)
    w, b = params[-1]
    return jnp.dot(h, w.astype(cdt), preferred_element_type=jnp.float32) + b


if __name__ == "__main__":
    key = jax.random.PRNGKey(0)
    k_x, k_x2, k_x3, k_p = jax.random.split(key, 4)

    input_dimension = 16
    output_dimension = 8
    params = init_params(k_p, input_dimension, output_dimension)

    # --- bf16 default compute path (batch=8), vs an identical-recipe reference.
    prepped_bf16, d_out = prepare_params(params, jnp.bfloat16)
    batch = 8
    x = jax.random.normal(k_x, (batch, input_dimension), jnp.float32)
    out = jax.block_until_ready(mlp_forward(x, prepped_bf16, d_out))
    ref = reference_forward_emulated(x, params, jnp.bfloat16)
    assert out.shape == (batch, output_dimension)
    assert jnp.allclose(out, ref, atol=5e-3, rtol=5e-3), "bf16-path mismatch"

    # --- f32 compute path vs the exact f32 reference (tight tolerance).
    prepped_f32, _ = prepare_params(params, jnp.float32)
    out_f32 = jax.block_until_ready(mlp_forward(x, prepped_f32, d_out))
    ref_f32 = reference_forward(x, params)
    assert jnp.allclose(out_f32, ref_f32, atol=1e-4, rtol=1e-4), "f32-path mismatch"

    # --- Ragged batch with caller-supplied tile (exercises batch padding).
    batch2 = 20
    x2 = jax.random.normal(k_x2, (batch2, input_dimension), jnp.float32)
    out2 = jax.block_until_ready(mlp_forward(x2, prepped_f32, d_out, block_b=16))
    ref2 = reference_forward(x2, params)
    assert out2.shape == (batch2, output_dimension)
    assert jnp.allclose(out2, ref2, atol=1e-4, rtol=1e-4), "ragged-tail mismatch"

    # --- Auto tile pick -> multi-step (even) grid path.
    batch3 = 104
    x3 = jax.random.normal(k_x3, (batch3, input_dimension), jnp.float32)
    out3 = jax.block_until_ready(mlp_forward(x3, prepped_bf16, d_out))
    ref3 = reference_forward_emulated(x3, params, jnp.bfloat16)
    assert out3.shape == (batch3, output_dimension)
    assert jnp.allclose(out3, ref3, atol=5e-3, rtol=5e-3), "multi-step mismatch"

    print("KERNEL_OK")
</pallas_src>

<mosaic_0001>
module attributes {stable_mosaic.version = 11 : i64} {
  func.func @mlp_kernel(%arg0: i32, %arg1: memref<8x16xbf16, #tpu.memory_space<vmem>>, %arg2: memref<16x128xbf16, #tpu.memory_space<vmem>>, %arg3: memref<1x128xf32, #tpu.memory_space<vmem>>, %arg4: memref<128x128xbf16, #tpu.memory_space<vmem>>, %arg5: memref<1x128xf32, #tpu.memory_space<vmem>>, %arg6: memref<128x128xbf16, #tpu.memory_space<vmem>>, %arg7: memref<1x128xf32, #tpu.memory_space<vmem>>, %arg8: memref<128x128xbf16, #tpu.memory_space<vmem>>, %arg9: memref<1x128xf32, #tpu.memory_space<vmem>>, %arg10: memref<8x128xf32, #tpu.memory_space<vmem>>) attributes {dimension_semantics = [#tpu.dimension_semantics<parallel>], iteration_bounds = array<i64: 1>, scalar_prefetch = 0 : i64, scratch_operands = 0 : i64, tpu.core_type = #tpu.core_type<tc>, window_params = [{transform_indices = @transform_0, window_bounds = array<i64: 8, 16>}, {pipeline_mode = #tpu.pipeline_mode<synchronous>, transform_indices = @transform_1, window_bounds = array<i64: 16, 128>}, {pipeline_mode = #tpu.pipeline_mode<synchronous>, transform_indices = @transform_2, window_bounds = array<i64: 1, 128>}, {pipeline_mode = #tpu.pipeline_mode<synchronous>, transform_indices = @transform_3, window_bounds = array<i64: 128, 128>}, {pipeline_mode = #tpu.pipeline_mode<synchronous>, transform_indices = @transform_4, window_bounds = array<i64: 1, 128>}, {pipeline_mode = #tpu.pipeline_mode<synchronous>, transform_indices = @transform_5, window_bounds = array<i64: 128, 128>}, {pipeline_mode = #tpu.pipeline_mode<synchronous>, transform_indices = @transform_6, window_bounds = array<i64: 1, 128>}, {pipeline_mode = #tpu.pipeline_mode<synchronous>, transform_indices = @transform_7, window_bounds = array<i64: 128, 128>}, {pipeline_mode = #tpu.pipeline_mode<synchronous>, transform_indices = @transform_8, window_bounds = array<i64: 1, 128>}, {transform_indices = @transform_9, window_bounds = array<i64: 8, 128>}]} {
    %c0 = arith.constant 0 : index
    %c0_0 = arith.constant 0 : index
    %0 = vector.load %arg1[%c0, %c0_0] : memref<8x16xbf16, #tpu.memory_space<vmem>>, vector<8x16xbf16>
    %c0_1 = arith.constant 0 : index
    %c0_2 = arith.constant 0 : index
    %1 = vector.load %arg2[%c0_1, %c0_2] : memref<16x128xbf16, #tpu.memory_space<vmem>>, vector<16x128xbf16>
    %cst = arith.constant dense<0.000000e+00> : vector<8x128xf32>
    %2 = tpu.matmul %0, %1, %cst {dimension_numbers = #tpu.dot_dimension_numbers<[1], [0], [0], [1], [0, 0, 1, 1], [], []>} : vector<8x16xbf16>, vector<16x128xbf16>, vector<8x128xf32> -> vector<8x128xf32>
    %c0_3 = arith.constant 0 : index
    %c0_4 = arith.constant 0 : index
    %3 = vector.load %arg3[%c0_3, %c0_4] : memref<1x128xf32, #tpu.memory_space<vmem>>, vector<1x128xf32>
    %4 = vector.broadcast %3 : vector<1x128xf32> to vector<8x128xf32>
    %5 = arith.addf %2, %4 : vector<8x128xf32>
    %cst_5 = arith.constant 0.000000e+00 : f32
    %6 = vector.broadcast %cst_5 : f32 to vector<8x128xf32>
    %7 = arith.maximumf %5, %6 : vector<8x128xf32>
    %8 = arith.truncf %7 : vector<8x128xf32> to vector<8x128xbf16>
    %c0_6 = arith.constant 0 : index
    %c0_7 = arith.constant 0 : index
    %9 = vector.load %arg4[%c0_6, %c0_7] : memref<128x128xbf16, #tpu.memory_space<vmem>>, vector<128x128xbf16>
    %cst_8 = arith.constant dense<0.000000e+00> : vector<8x128xf32>
    %10 = tpu.matmul %8, %9, %cst_8 {dimension_numbers = #tpu.dot_dimension_numbers<[1], [0], [0], [1], [0, 0, 1, 1], [], []>} : vector<8x128xbf16>, vector<128x128xbf16>, vector<8x128xf32> -> vector<8x128xf32>
    %c0_9 = arith.constant 0 : index
    %c0_10 = arith.constant 0 : index
    %11 = vector.load %arg5[%c0_9, %c0_10] : memref<1x128xf32, #tpu.memory_space<vmem>>, vector<1x128xf32>
    %12 = vector.broadcast %11 : vector<1x128xf32> to vector<8x128xf32>
    %13 = arith.addf %10, %12 : vector<8x128xf32>
    %cst_11 = arith.constant 0.000000e+00 : f32
    %14 = vector.broadcast %cst_11 : f32 to vector<8x128xf32>
    %15 = arith.maximumf %13, %14 : vector<8x128xf32>
    %16 = arith.truncf %15 : vector<8x128xf32> to vector<8x128xbf16>
    %c0_12 = arith.constant 0 : index
    %c0_13 = arith.constant 0 : index
    %17 = vector.load %arg6[%c0_12, %c0_13] : memref<128x128xbf16, #tpu.memory_space<vmem>>, vector<128x128xbf16>
    %cst_14 = arith.constant dense<0.000000e+00> : vector<8x128xf32>
    %18 = tpu.matmul %16, %17, %cst_14 {dimension_numbers = #tpu.dot_dimension_numbers<[1], [0], [0], [1], [0, 0, 1, 1], [], []>} : vector<8x128xbf16>, vector<128x128xbf16>, vector<8x128xf32> -> vector<8x128xf32>
    %c0_15 = arith.constant 0 : index
    %c0_16 = arith.constant 0 : index
    %19 = vector.load %arg7[%c0_15, %c0_16] : memref<1x128xf32, #tpu.memory_space<vmem>>, vector<1x128xf32>
    %20 = vector.broadcast %19 : vector<1x128xf32> to vector<8x128xf32>
    %21 = arith.addf %18, %20 : vector<8x128xf32>
    %cst_17 = arith.constant 0.000000e+00 : f32
    %22 = vector.broadcast %cst_17 : f32 to vector<8x128xf32>
    %23 = arith.maximumf %21, %22 : vector<8x128xf32>
    %24 = arith.truncf %23 : vector<8x128xf32> to vector<8x128xbf16>
    %c0_18 = arith.constant 0 : index
    %c0_19 = arith.constant 0 : index
    %25 = vector.load %arg8[%c0_18, %c0_19] : memref<128x128xbf16, #tpu.memory_space<vmem>>, vector<128x128xbf16>
    %cst_20 = arith.constant dense<0.000000e+00> : vector<8x128xf32>
    %26 = tpu.matmul %24, %25, %cst_20 {dimension_numbers = #tpu.dot_dimension_numbers<[1], [0], [0], [1], [0, 0, 1, 1], [], []>} : vector<8x128xbf16>, vector<128x128xbf16>, vector<8x128xf32> -> vector<8x128xf32>
    %c0_21 = arith.constant 0 : index
    %c0_22 = arith.constant 0 : index
    %27 = vector.load %arg9[%c0_21, %c0_22] : memref<1x128xf32, #tpu.memory_space<vmem>>, vector<1x128xf32>
    %28 = vector.broadcast %27 : vector<1x128xf32> to vector<8x128xf32>
    %29 = arith.addf %26, %28 : vector<8x128xf32>
    %c0_23 = arith.constant 0 : index
    %c0_24 = arith.constant 0 : index
    %30 = vector.load %arg10[%c0_23, %c0_24] : memref<8x128xf32, #tpu.memory_space<vmem>>, vector<8x128xf32>
    tpu.vector_store %arg10[%c0_23, %c0_24], %29 {strides = array<i32>} : memref<8x128xf32, #tpu.memory_space<vmem>>, vector<8x128xf32>,
    return
  }
  func.func @transform_0(%arg0: i32) -> (i32, i32) {
    %c0_i32 = arith.constant 0 : i32
    %c0_i32_0 = arith.constant 0 : i32
    return %arg0, %c0_i32 : i32, i32
  }
  func.func @transform_1(%arg0: i32) -> (i32, i32) {
    %c0_i32 = arith.constant 0 : i32
    %c0_i32_0 = arith.constant 0 : i32
    %c0_i32_1 = arith.constant 0 : i32
    return %c0_i32, %c0_i32_0 : i32, i32
  }
  func.func @transform_2(%arg0: i32) -> (i32, i32) {
    %c0_i32 = arith.constant 0 : i32
    %c0_i32_0 = arith.constant 0 : i32
    %c0_i32_1 = arith.constant 0 : i32
    return %c0_i32, %c0_i32_0 : i32, i32
  }
  func.func @transform_3(%arg0: i32) -> (i32, i32) {
    %c0_i32 = arith.constant 0 : i32
    %c0_i32_0 = arith.constant 0 : i32
    %c0_i32_1 = arith.constant 0 : i32
    return %c0_i32, %c0_i32_0 : i32, i32
  }
  func.func @transform_4(%arg0: i32) -> (i32, i32) {
    %c0_i32 = arith.constant 0 : i32
    %c0_i32_0 = arith.constant 0 : i32
    %c0_i32_1 = arith.constant 0 : i32
    return %c0_i32, %c0_i32_0 : i32, i32
  }
  func.func @transform_5(%arg0: i32) -> (i32, i32) {
    %c0_i32 = arith.constant 0 : i32
    %c0_i32_0 = arith.constant 0 : i32
    %c0_i32_1 = arith.constant 0 : i32
    return %c0_i32, %c0_i32_0 : i32, i32
  }
  func.func @transform_6(%arg0: i32) -> (i32, i32) {
    %c0_i32 = arith.constant 0 : i32
    %c0_i32_0 = arith.constant 0 : i32
    %c0_i32_1 = arith.constant 0 : i32
    return %c0_i32, %c0_i32_0 : i32, i32
  }
  func.func @transform_7(%arg0: i32) -> (i32, i32) {
    %c0_i32 = arith.constant 0 : i32
    %c0_i32_0 = arith.constant 0 : i32
    %c0_i32_1 = arith.constant 0 : i32
    return %c0_i32, %c0_i32_0 : i32, i32
  }
  func.func @transform_8(%arg0: i32) -> (i32, i32) {
    %c0_i32 = arith.constant 0 : i32
    %c0_i32_0 = arith.constant 0 : i32
    %c0_i32_1 = arith.constant 0 : i32
    return %c0_i32, %c0_i32_0 : i32, i32
  }
  func.func @transform_9(%arg0: i32) -> (i32, i32) {
    %c0_i32 = arith.constant 0 : i32
    %c0_i32_0 = arith.constant 0 : i32
    return %arg0, %c0_i32 : i32, i32
  }
}

</mosaic_0001>

<llo_original>
// kernel: mlp_forward.1
$region0: #{mlp_forward.1}
  #allocation0 [shape = 'u32[]', space=smem, size = 0x4, offset = 0x4, fixed_abs, tag = 'smem constant byte address 0x4 - core index']
  #allocation1 [shape = 'u32[144,128]{1,0:T(1,128)}', space=vmem, size = 0x12000, scoped, tag = 'internal scratch']
  %s0 = inlined_call_operand.vmem [shape: bf16[8,16], index: 0, kind: input, shape index: {}]
  %s1 = inlined_call_operand.vmem [shape: bf16[16,128], index: 1, kind: input, shape index: {}]
  %s2 = inlined_call_operand.vmem [shape: f32[1,128], index: 2, kind: input, shape index: {}]
  %s3 = inlined_call_operand.hbm [shape: bf16[128,128], index: 3, kind: input, shape index: {}]
  %s4 = inlined_call_operand.vmem [shape: f32[1,128], index: 4, kind: input, shape index: {}]
  %s5 = inlined_call_operand.hbm [shape: bf16[128,128], index: 5, kind: input, shape index: {}]
  %s6 = inlined_call_operand.vmem [shape: f32[1,128], index: 6, kind: input, shape index: {}]
  %s7 = inlined_call_operand.hbm [shape: bf16[128,128], index: 7, kind: input, shape index: {}]
  %s8 = inlined_call_operand.vmem [shape: f32[1,128], index: 8, kind: input, shape index: {}]
  %s9 = inlined_call_operand.hbm [shape: f32[8,128], index: 9, kind: output, shape index: {}]
  %s10 = sld [smem:[#allocation0]]
  $region58: #{mlp_forward.1} parent=0
    _
  %s12 = ssub.s32 1, %s10
  %s13 = scalar_select 0, %s12, %s10
  $region1: #{mlp_forward.1} parent=0
    #allocation2 [shape = 'u8[32768]{0}', space=vmem, size = 0x8000, scoped, tag = 'input window, operand 3, single buffered']
    #allocation3 [shape = 's32[1]{0}', space=sflag, size = 0x4, scoped, tag = 'scoped memory for mlp_forward.1']
    #allocation4 [shape = 's32[1]{0}', space=sflag, size = 0x4, scoped, tag = 'scoped memory for mlp_forward.1']
    #allocation5 [shape = 'u8[32768]{0}', space=vmem, size = 0x8000, scoped, tag = 'input window, operand 5, single buffered']
    #allocation6 [shape = 's32[1]{0}', space=sflag, size = 0x4, scoped, tag = 'scoped memory for mlp_forward.1']
    #allocation7 [shape = 'u8[32768]{0}', space=vmem, size = 0x8000, scoped, tag = 'input window, operand 7, single buffered']
    #allocation8 [shape = 'u8[4096]{0}', space=vmem, size = 0x1000, scoped, tag = 'output window, operand 0, single buffered']
    %14 = vsyncpa [#allocation3], 0
    %15 = vsyncpa [#allocation6], 0
    %16 = vsyncpa [#allocation4], 0
    // Predicated region
    $region2: #{mlp_forward.1} parent=1 // pred_check
      _
    $region3: #{mlp_forward.1} parent=1 // pred_check_branch
      %18 = sbr.rel (0) target = $region5
    $region4: #{mlp_forward.1} parent=1 // pred_region
      _
    $region5: #{mlp_forward.1} parent=1 // pred_fallthru
      _
    // Predicated region
    $region6: #{mlp_forward.1} parent=1 // pred_check
      _
    $region7: #{mlp_forward.1} parent=1 // pred_check_branch
      %20 = sbr.rel (0) target = $region9
    $region8: #{mlp_forward.1} parent=1 // pred_region
      _
    $region9: #{mlp_forward.1} parent=1 // pred_fallthru
      _
    // Predicated region
    $region10: #{mlp_forward.1} parent=1 // pred_check
      _
    $region11: #{mlp_forward.1} parent=1 // pred_check_branch
      %22 = sbr.rel (0) target = $region13
    $region12: #{mlp_forward.1} parent=1 // pred_region
      _
    $region13: #{mlp_forward.1} parent=1 // pred_fallthru
      _
    // Predicated region
    $region14: #{mlp_forward.1} parent=1 // pred_check
      _
    $region15: #{mlp_forward.1} parent=1 // pred_check_branch
      %24 = sbr.rel (0) target = $region17
    $region16: #{mlp_forward.1} parent=1 // pred_region
      %s26 = ssub.s32 1024, 1024
      %27 = vsyncadd [#allocation3], %s26
      %s28 = sshll.u32 [#allocation2], 4
      %s29 = int_to_ptr.vmem [resolvable:$true] %s28
      %34 = dma.hbm_to_vmem [thread:$0]  %s3, 1024, %s29, [#allocation3], 64, 64, 4
    $region17: #{mlp_forward.1} parent=1 // pred_fallthru
      _
    // Predicated region
    $region18: #{mlp_forward.1} parent=1 // pred_check
      _
    $region19: #{mlp_forward.1} parent=1 // pred_check_branch
      %36 = sbr.rel (0) target = $region21
    $region20: #{mlp_forward.1} parent=1 // pred_region
      _
    $region21: #{mlp_forward.1} parent=1 // pred_fallthru
      _
    // Predicated region
    $region22: #{mlp_forward.1} parent=1 // pred_check
      _
    $region23: #{mlp_forward.1} parent=1 // pred_check_branch
      %38 = sbr.rel (0) target = $region25
    $region24: #{mlp_forward.1} parent=1 // pred_region
      %s40 = ssub.s32 1024, 1024
      %41 = vsyncadd [#allocation6], %s40
      %s42 = sshll.u32 [#allocation5], 4
      %s43 = int_to_ptr.vmem [resolvable:$true] %s42
      %48 = dma.hbm_to_vmem [thread:$0]  %s5, 1024, %s43, [#allocation6], 64, 64, 4
    $region25: #{mlp_forward.1} parent=1 // pred_fallthru
      _
    // Predicated region
    $region26: #{mlp_forward.1} parent=1 // pred_check
      _
    $region27: #{mlp_forward.1} parent=1 // pred_check_branch
      %50 = sbr.rel (0) target = $region29
    $region28: #{mlp_forward.1} parent=1 // pred_region
      _
    $region29: #{mlp_forward.1} parent=1 // pred_fallthru
      _
    // Predicated region
    $region30: #{mlp_forward.1} parent=1 // pred_check
      _
    $region31: #{mlp_forward.1} parent=1 // pred_check_branch
      %52 = sbr.rel (0) target = $region33
    $region32: #{mlp_forward.1} parent=1 // pred_region
      %s54 = ssub.s32 1024, 1024
      %55 = vsyncadd [#allocation6], %s54
      %s56 = sshll.u32 [#allocation7], 4
      %s57 = int_to_ptr.vmem [resolvable:$true] %s56
      %62 = dma.hbm_to_vmem [thread:$0]  %s7, 1024, %s57, [#allocation6], 64, 64, 4
    $region33: #{mlp_forward.1} parent=1 // pred_fallthru
      _
    // Predicated region
    $region34: #{mlp_forward.1} parent=1 // pred_check
      _
    $region35: #{mlp_forward.1} parent=1 // pred_check_branch
      %64 = sbr.rel (0) target = $region37
    $region36: #{mlp_forward.1} parent=1 // pred_region
      _
    $region37: #{mlp_forward.1} parent=1 // pred_fallthru
      _
    // Predicated region
    $region38: #{mlp_forward.1} parent=1 // pred_check
      _
    $region39: #{mlp_forward.1} parent=1 // pred_check_branch
      %66 = sbr.rel (0) target = $region41
    $region40: #{mlp_forward.1} parent=1 // pred_region
      %67 = dma.done [#allocation3], 1024
    $region41: #{mlp_forward.1} parent=1 // pred_fallthru
      _
    // Predicated region
    $region42: #{mlp_forward.1} parent=1 // pred_check
      _
    $region43: #{mlp_forward.1} parent=1 // pred_check_branch
      %69 = sbr.rel (0) target = $region45
    $region44: #{mlp_forward.1} parent=1 // pred_region
      %70 = dma.done [#allocation6], 1024
    $region45: #{mlp_forward.1} parent=1 // pred_fallthru
      _
    // Predicated region
    $region46: #{mlp_forward.1} parent=1 // pred_check
      _
    $region47: #{mlp_forward.1} parent=1 // pred_check_branch
      %72 = sbr.rel (0) target = $region49
    $region48: #{mlp_forward.1} parent=1 // pred_region
      %73 = dma.done [#allocation6], 1024
    $region49: #{mlp_forward.1} parent=1 // pred_fallthru
      _
    %v75 = vld [vmem:[%s0] sm:$0xf]
    %v76 = vld [vmem:[%s1] sm:$0xf]
    %v77 = vld [vmem:[%s1 + $0x4] sm:$0xf]
    %v78 = vld [vmem:[%s2] sm:$0x1]
    %v80 = vlaneseq
    %v81 = vshrl.u32 %v80, 7
    %v82 = vsub.s32 0, %v81
    %v83 = vrot.slane %v78, %v82
    %v87 = vunpack.c.l.b16 %v76
    %v88 = vunpack.c.l.b16 %v77
    %v89 = vpack.c.b16 %v88, %v87
    %vm91 = vcmask 130048
    %v93 = vsel %vm91, %v75, 0
    %95 = vmatprep.subr.bf16.mxu0 0
    %96 = vmatpush1.bf16.msra.mxu0 0
    %97 = vmatprep.subr.bf16.mxu0 0
    %98 = vmatpush1.bf16.msra.mxu0 0
    %99 = vmatprep.subr.bf16.mxu0 0
    %100 = vmatpush1.bf16.msra.mxu0 0
    %101 = vmatprep.subr.bf16.mxu0 0
    %102 = vmatpush1.bf16.msra.mxu0 0
    %103 = vmatprep.subr.bf16.mxu0 0
    %104 = vmatpush1.bf16.msra.mxu0 0
    %105 = vmatprep.subr.bf16.mxu0 0
    %106 = vmatpush1.bf16.msra.mxu0 0
    %107 = vmatprep.subr.bf16.mxu0 0
    %108 = vmatpush1.bf16.msra.mxu0 0
    %109 = vmatprep.subr.bf16.mxu0 0
    %110 = vmatpush1.bf16.msra.mxu0 %v89
    %111 = vmatprep.subr.bf16.mxu0 0
    %112 = vmatpush2.bf16.msra.mxu0 0
    %113 = vmatprep.subr.bf16.mxu0 0
    %114 = vmatpush2.bf16.msra.mxu0 0
    %115 = vmatprep.subr.bf16.mxu0 0
    %116 = vmatpush2.bf16.msra.mxu0 0
    %117 = vmatprep.subr.bf16.mxu0 0
    %118 = vmatpush2.bf16.msra.mxu0 0
    %119 = vmatprep.subr.bf16.mxu0 0
    %120 = vmatpush2.bf16.msra.mxu0 0
    %121 = vmatprep.subr.bf16.mxu0 0
    %122 = vmatpush2.bf16.msra.mxu0 0
    %123 = vmatprep.subr.bf16.mxu0 0
    %124 = vmatpush2.bf16.msra.mxu0 0
    %125 = vmatprep.subr.bf16.mxu0 0
    %126 = vmatpush2.bf16.msra.mxu0 0
    %127 = vmatprep.mubr.bf16.mxu0 0
    %128 = vmatmul.mubr.bf16.gmra.mxu0 %v93
    %v129 = vpop.f32.mrf.mxu0
    %v130 = vadd.f32 %v83, %v129
    %v131 = vpop.f32.mrf.mxu0
    %v132 = vpop.f32.mrf.mxu0
    %v133 = vpop.f32.mrf.mxu0
    %134 = vdwg.mxu0
    %v135 = vmax.f32 %v130, 0.0
    %v136 = vpack.c.bf16 %v135, %v135
    %v137 = vld [vmem:[#allocation2] sm:$0xf]
    %v138 = vld [vmem:[#allocation2 + $0x4] sm:$0xf]
    %v139 = vld [vmem:[#allocation2 + $0x8] sm:$0xf]
    %v140 = vld [vmem:[#allocation2 + $0xc] sm:$0xf]
    %v141 = vld [vmem:[#allocation2 + $0x10] sm:$0xf]
    %v142 = vld [vmem:[#allocation2 + $0x14] sm:$0xf]
    %v143 = vld [vmem:[#allocation2 + $0x18] sm:$0xf]
    %v144 = vld [vmem:[#allocation2 + $0x1c] sm:$0xf]
    %v145 = vld [vmem:[#allocation2 + $0x20] sm:$0xf]
    %v146 = vld [vmem:[#allocation2 + $0x24] sm:$0xf]
    %v147 = vld [vmem:[#allocation2 + $0x28] sm:$0xf]
    %v148 = vld [vmem:[#allocation2 + $0x2c] sm:$0xf]
    %v149 = vld [vmem:[#allocation2 + $0x30] sm:$0xf]
    %v150 = vld [vmem:[#allocation2 + $0x34] sm:$0xf]
    %v151 = vld [vmem:[#allocation2 + $0x38] sm:$0xf]
    %v152 = vld [vmem:[#allocation2 + $0x3c] sm:$0xf]
    %v153 = vld [vmem:[%s4] sm:$0x1]
    %v155 = vlaneseq
    %v156 = vshrl.u32 %v155, 7
    %v157 = vsub.s32 0, %v156
    %v158 = vrot.slane %v153, %v157
    %v176 = vunpack.c.l.b16 %v137
    %v177 = vunpack.c.l.b16 %v138
    %v178 = vunpack.c.l.b16 %v139
    %v179 = vunpack.c.l.b16 %v140
    %v180 = vunpack.c.l.b16 %v141
    %v181 = vunpack.c.l.b16 %v142
    %v182 = vunpack.c.l.b16 %v143
    %v183 = vunpack.c.l.b16 %v144
    %v184 = vunpack.c.l.b16 %v145
    %v185 = vunpack.c.l.b16 %v146
    %v186 = vunpack.c.l.b16 %v147
    %v187 = vunpack.c.l.b16 %v148
    %v188 = vunpack.c.l.b16 %v149
    %v189 = vunpack.c.l.b16 %v150
    %v190 = vunpack.c.l.b16 %v151
    %v191 = vunpack.c.l.b16 %v152
    %v192 = vpack.c.b16 %v177, %v176
    %v193 = vpack.c.b16 %v179, %v178
    %v194 = vpack.c.b16 %v181, %v180
    %v195 = vpack.c.b16 %v183, %v182
    %v196 = vpack.c.b16 %v185, %v184
    %v197 = vpack.c.b16 %v187, %v186
    %v198 = vpack.c.b16 %v189, %v188
    %v199 = vpack.c.b16 %v191, %v190
    %208 = vmatprep.subr.bf16.mxu0 0
    %209 = vmatpush1.bf16.msra.mxu0 %v199
    %210 = vmatprep.subr.bf16.mxu0 0
    %211 = vmatpush1.bf16.msra.mxu0 %v198
    %212 = vmatprep.subr.bf16.mxu0 0
    %213 = vmatpush1.bf16.msra.mxu0 %v197
    %214 = vmatprep.subr.bf16.mxu0 0
    %215 = vmatpush1.bf16.msra.mxu0 %v196
    %216 = vmatprep.subr.bf16.mxu0 0
    %217 = vmatpush1.bf16.msra.mxu0 %v195
    %218 = vmatprep.subr.bf16.mxu0 0
    %219 = vmatpush1.bf16.msra.mxu0 %v194
    %220 = vmatprep.subr.bf16.mxu0 0
    %221 = vmatpush1.bf16.msra.mxu0 %v193
    %222 = vmatprep.subr.bf16.mxu0 0
    %223 = vmatpush1.bf16.msra.mxu0 %v192
    %224 = vmatprep.subr.bf16.mxu0 0
    %225 = vmatpush2.bf16.msra.mxu0 0
    %226 = vmatprep.subr.bf16.mxu0 0
    %227 = vmatpush2.bf16.msra.mxu0 0
    %228 = vmatprep.subr.bf16.mxu0 0
    %229 = vmatpush2.bf16.msra.mxu0 0
    %230 = vmatprep.subr.bf16.mxu0 0
    %231 = vmatpush2.bf16.msra.mxu0 0
    %232 = vmatprep.subr.bf16.mxu0 0
    %233 = vmatpush2.bf16.msra.mxu0 0
    %234 = vmatprep.subr.bf16.mxu0 0
    %235 = vmatpush2.bf16.msra.mxu0 0
    %236 = vmatprep.subr.bf16.mxu0 0
    %237 = vmatpush2.bf16.msra.mxu0 0
    %238 = vmatprep.subr.bf16.mxu0 0
    %239 = vmatpush2.bf16.msra.mxu0 0
    %240 = vmatprep.mubr.bf16.mxu0 0
    %241 = vmatmul.mubr.bf16.gmra.mxu0 %v136
    %v242 = vpop.f32.mrf.mxu0
    %v243 = vadd.f32 %v158, %v242
    %v244 = vpop.f32.mrf.mxu0
    %v245 = vpop.f32.mrf.mxu0
    %v246 = vpop.f32.mrf.mxu0
    %247 = vdwg.mxu0
    %v248 = vmax.f32 %v243, 0.0
    %v249 = vpack.c.bf16 %v248, %v248
    %v250 = vld [vmem:[#allocation5] sm:$0xf]
    %v251 = vld [vmem:[#allocation5 + $0x4] sm:$0xf]
    %v252 = vld [vmem:[#allocation5 + $0x8] sm:$0xf]
    %v253 = vld [vmem:[#allocation5 + $0xc] sm:$0xf]
    %v254 = vld [vmem:[#allocation5 + $0x10] sm:$0xf]
    %v255 = vld [vmem:[#allocation5 + $0x14] sm:$0xf]
    %v256 = vld [vmem:[#allocation5 + $0x18] sm:$0xf]
    %v257 = vld [vmem:[#allocation5 + $0x1c] sm:$0xf]
    %v258 = vld [vmem:[#allocation5 + $0x20] sm:$0xf]
    %v259 = vld [vmem:[#allocation5 + $0x24] sm:$0xf]
    %v260 = vld [vmem:[#allocation5 + $0x28] sm:$0xf]
    %v261 = vld [vmem:[#allocation5 + $0x2c] sm:$0xf]
    %v262 = vld [vmem:[#allocation5 + $0x30] sm:$0xf]
    %v263 = vld [vmem:[#allocation5 + $0x34] sm:$0xf]
    %v264 = vld [vmem:[#allocation5 + $0x38] sm:$0xf]
    %v265 = vld [vmem:[#allocation5 + $0x3c] sm:$0xf]
    %v266 = vld [vmem:[%s6] sm:$0x1]
    %v268 = vlaneseq
    %v269 = vshrl.u32 %v268, 7
    %v270 = vsub.s32 0, %v269
    %v271 = vrot.slane %v266, %v270
    %v289 = vunpack.c.l.b16 %v250
    %v290 = vunpack.c.l.b16 %v251
    %v291 = vunpack.c.l.b16 %v252
    %v292 = vunpack.c.l.b16 %v253
    %v293 = vunpack.c.l.b16 %v254
    %v294 = vunpack.c.l.b16 %v255
    %v295 = vunpack.c.l.b16 %v256
    %v296 = vunpack.c.l.b16 %v257
    %v297 = vunpack.c.l.b16 %v258
    %v298 = vunpack.c.l.b16 %v259
    %v299 = vunpack.c.l.b16 %v260
    %v300 = vunpack.c.l.b16 %v261
    %v301 = vunpack.c.l.b16 %v262
    %v302 = vunpack.c.l.b16 %v263
    %v303 = vunpack.c.l.b16 %v264
    %v304 = vunpack.c.l.b16 %v265
    %v305 = vpack.c.b16 %v290, %v289
    %v306 = vpack.c.b16 %v292, %v291
    %v307 = vpack.c.b16 %v294, %v293
    %v308 = vpack.c.b16 %v296, %v295
    %v309 = vpack.c.b16 %v298, %v297
    %v310 = vpack.c.b16 %v300, %v299
    %v311 = vpack.c.b16 %v302, %v301
    %v312 = vpack.c.b16 %v304, %v303
    %321 = vmatprep.subr.bf16.mxu0 0
    %322 = vmatpush1.bf16.msra.mxu0 %v312
    %323 = vmatprep.subr.bf16.mxu0 0
    %324 = vmatpush1.bf16.msra.mxu0 %v311
    %325 = vmatprep.subr.bf16.mxu0 0
    %326 = vmatpush1.bf16.msra.mxu0 %v310
    %327 = vmatprep.subr.bf16.mxu0 0
    %328 = vmatpush1.bf16.msra.mxu0 %v309
    %329 = vmatprep.subr.bf16.mxu0 0
    %330 = vmatpush1.bf16.msra.mxu0 %v308
    %331 = vmatprep.subr.bf16.mxu0 0
    %332 = vmatpush1.bf16.msra.mxu0 %v307
    %333 = vmatprep.subr.bf16.mxu0 0
    %334 = vmatpush1.bf16.msra.mxu0 %v306
    %335 = vmatprep.subr.bf16.mxu0 0
    %336 = vmatpush1.bf16.msra.mxu0 %v305
    %337 = vmatprep.subr.bf16.mxu0 0
    %338 = vmatpush2.bf16.msra.mxu0 0
    %339 = vmatprep.subr.bf16.mxu0 0
    %340 = vmatpush2.bf16.msra.mxu0 0
    %341 = vmatprep.subr.bf16.mxu0 0
    %342 = vmatpush2.bf16.msra.mxu0 0
    %343 = vmatprep.subr.bf16.mxu0 0
    %344 = vmatpush2.bf16.msra.mxu0 0
    %345 = vmatprep.subr.bf16.mxu0 0
    %346 = vmatpush2.bf16.msra.mxu0 0
    %347 = vmatprep.subr.bf16.mxu0 0
    %348 = vmatpush2.bf16.msra.mxu0 0
    %349 = vmatprep.subr.bf16.mxu0 0
    %350 = vmatpush2.bf16.msra.mxu0 0
    %351 = vmatprep.subr.bf16.mxu0 0
    %352 = vmatpush2.bf16.msra.mxu0 0
    %353 = vmatprep.mubr.bf16.mxu0 0
    %354 = vmatmul.mubr.bf16.gmra.mxu0 %v249
    %v355 = vpop.f32.mrf.mxu0
    %v356 = vadd.f32 %v271, %v355
    %v357 = vpop.f32.mrf.mxu0
    %v358 = vpop.f32.mrf.mxu0
    %v359 = vpop.f32.mrf.mxu0
    %360 = vdwg.mxu0
    %v361 = vmax.f32 %v356, 0.0
    %v362 = vpack.c.bf16 %v361, %v361
    %v363 = vld [vmem:[#allocation7] sm:$0xf]
    %v364 = vld [vmem:[#allocation7 + $0x4] sm:$0xf]
    %v365 = vld [vmem:[#allocation7 + $0x8] sm:$0xf]
    %v366 = vld [vmem:[#allocation7 + $0xc] sm:$0xf]
    %v367 = vld [vmem:[#allocation7 + $0x10] sm:$0xf]
    %v368 = vld [vmem:[#allocation7 + $0x14] sm:$0xf]
    %v369 = vld [vmem:[#allocation7 + $0x18] sm:$0xf]
    %v370 = vld [vmem:[#allocation7 + $0x1c] sm:$0xf]
    %v371 = vld [vmem:[#allocation7 + $0x20] sm:$0xf]
    %v372 = vld [vmem:[#allocation7 + $0x24] sm:$0xf]
    %v373 = vld [vmem:[#allocation7 + $0x28] sm:$0xf]
    %v374 = vld [vmem:[#allocation7 + $0x2c] sm:$0xf]
    %v375 = vld [vmem:[#allocation7 + $0x30] sm:$0xf]
    %v376 = vld [vmem:[#allocation7 + $0x34] sm:$0xf]
    %v377 = vld [vmem:[#allocation7 + $0x38] sm:$0xf]
    %v378 = vld [vmem:[#allocation7 + $0x3c] sm:$0xf]
    %v379 = vld [vmem:[%s8] sm:$0x1]
    %v381 = vlaneseq
    %v382 = vshrl.u32 %v381, 7
    %v383 = vsub.s32 0, %v382
    %v384 = vrot.slane %v379, %v383
    %v402 = vunpack.c.l.b16 %v363
    %v403 = vunpack.c.l.b16 %v364
    %v404 = vunpack.c.l.b16 %v365
    %v405 = vunpack.c.l.b16 %v366
    %v406 = vunpack.c.l.b16 %v367
    %v407 = vunpack.c.l.b16 %v368
    %v408 = vunpack.c.l.b16 %v369
    %v409 = vunpack.c.l.b16 %v370
    %v410 = vunpack.c.l.b16 %v371
    %v411 = vunpack.c.l.b16 %v372
    %v412 = vunpack.c.l.b16 %v373
    %v413 = vunpack.c.l.b16 %v374
    %v414 = vunpack.c.l.b16 %v375
    %v415 = vunpack.c.l.b16 %v376
    %v416 = vunpack.c.l.b16 %v377
    %v417 = vunpack.c.l.b16 %v378
    %v418 = vpack.c.b16 %v403, %v402
    %v419 = vpack.c.b16 %v405, %v404
    %v420 = vpack.c.b16 %v407, %v406
    %v421 = vpack.c.b16 %v409, %v408
    %v422 = vpack.c.b16 %v411, %v410
    %v423 = vpack.c.b16 %v413, %v412
    %v424 = vpack.c.b16 %v415, %v414
    %v425 = vpack.c.b16 %v417, %v416
    %434 = vmatprep.subr.bf16.mxu0 0
    %435 = vmatpush1.bf16.msra.mxu0 %v425
    %436 = vmatprep.subr.bf16.mxu0 0
    %437 = vmatpush1.bf16.msra.mxu0 %v424
    %438 = vmatprep.subr.bf16.mxu0 0
    %439 = vmatpush1.bf16.msra.mxu0 %v423
    %440 = vmatprep.subr.bf16.mxu0 0
    %441 = vmatpush1.bf16.msra.mxu0 %v422
    %442 = vmatprep.subr.bf16.mxu0 0
    %443 = vmatpush1.bf16.msra.mxu0 %v421
    %444 = vmatprep.subr.bf16.mxu0 0
    %445 = vmatpush1.bf16.msra.mxu0 %v420
    %446 = vmatprep.subr.bf16.mxu0 0
    %447 = vmatpush1.bf16.msra.mxu0 %v419
    %448 = vmatprep.subr.bf16.mxu0 0
    %449 = vmatpush1.bf16.msra.mxu0 %v418
    %450 = vmatprep.subr.bf16.mxu0 0
    %451 = vmatpush2.bf16.msra.mxu0 0
    %452 = vmatprep.subr.bf16.mxu0 0
    %453 = vmatpush2.bf16.msra.mxu0 0
    %454 = vmatprep.subr.bf16.mxu0 0
    %455 = vmatpush2.bf16.msra.mxu0 0
    %456 = vmatprep.subr.bf16.mxu0 0
    %457 = vmatpush2.bf16.msra.mxu0 0
    %458 = vmatprep.subr.bf16.mxu0 0
    %459 = vmatpush2.bf16.msra.mxu0 0
    %460 = vmatprep.subr.bf16.mxu0 0
    %461 = vmatpush2.bf16.msra.mxu0 0
    %462 = vmatprep.subr.bf16.mxu0 0
    %463 = vmatpush2.bf16.msra.mxu0 0
    %464 = vmatprep.subr.bf16.mxu0 0
    %465 = vmatpush2.bf16.msra.mxu0 0
    %466 = vmatprep.mubr.bf16.mxu0 0
    %467 = vmatmul.mubr.bf16.gmra.mxu0 %v362
    %v468 = vpop.f32.mrf.mxu0
    %v469 = vadd.f32 %v384, %v468
    %v470 = vpop.f32.mrf.mxu0
    %v471 = vpop.f32.mrf.mxu0
    %v472 = vpop.f32.mrf.mxu0
    %473 = vdwg.mxu0
    %474 = vst [vmem:[#allocation8] sm:$0xff] %v469
    // Predicated region
    $region50: #{mlp_forward.1} parent=1 // pred_check
      _
    $region51: #{mlp_forward.1} parent=1 // pred_check_branch
      %476 = sbr.rel (0) target = $region53
    $region52: #{mlp_forward.1} parent=1 // pred_region
      %s478 = ssub.s32 128, 128
      %479 = vsyncadd [#allocation4], %s478
      %s481 = sshll.u32 [#allocation8], 4
      %s482 = int_to_ptr.vmem [resolvable:$true] %s481
      %484 = dma.vmem_to_hbm [thread:$0]  %s482, 128, %s9, [#allocation4]
    $region53: #{mlp_forward.1} parent=1 // pred_fallthru
      _
    // Predicated region
    $region54: #{mlp_forward.1} parent=1 // pred_check
      _
    $region55: #{mlp_forward.1} parent=1 // pred_check_branch
      %486 = sbr.rel (0) target = $region57
    $region56: #{mlp_forward.1} parent=1 // pred_region
      %487 = dma.done [#allocation4], 128
    $region57: #{mlp_forward.1} parent=1 // pred_fallthru
      _
    %488 = vsyncpa [#allocation3], 1
    %489 = vsyncpa [#allocation6], 1
    %490 = vsyncpa [#allocation4], 1

</llo_original>
